<compile_context>
chip_gen: v5e
topology: v5e:2x2
jax: 0.10.0
libtpu: 0.0.40
codegen_flags: <defaults>
</compile_context>

<pallas_src>
import functools
import math

import jax
import jax.numpy as jnp
from jax.experimental import pallas as pl
from jax.experimental.pallas import tpu as pltpu


# ---------------------------------------------------------------------------
# Tiling helper
# ---------------------------------------------------------------------------

def _pick_tile(dim, target):
    """Largest of (target, dim) that evenly divides dim without producing a
    non-(8,128)-aligned partial block: use `target` if it divides `dim`,
    otherwise fall back to the full dimension (always a legal block)."""
    t = min(target, dim)
    return t if dim % t == 0 else dim


# ---------------------------------------------------------------------------
# Kernels
# ---------------------------------------------------------------------------

def _linear_kernel(x_ref, w_ref, b_ref, o_ref):
    # x: (tm, K) bf16, w: (K, tn) bf16 (already transposed to (in, out)),
    # b: (1, tn) f32.  MXU consumes native layouts; accumulate in f32.
    o_ref[...] = (
        jnp.dot(x_ref[...], w_ref[...], preferred_element_type=jnp.float32)
        + b_ref[...]
    ).astype(o_ref.dtype)


def _attention_kernel(q_ref, k_ref, v_ref, o_ref, *, scale):
    # Blocks are (H, S, d_k): all heads of one batch element per grid step,
    # so the MXU sees H-batched matmuls and the softmax stays on-chip.
    q = q_ref[...] * scale                       # scale S*d_k elems, not S*S
    s = jnp.einsum("hqd,hkd->hqk", q, k_ref[...],
                   preferred_element_type=jnp.float32)
    m = jnp.max(s, axis=-1, keepdims=True)
    e = jnp.exp(s - m)
    p = e * pl.reciprocal(jnp.sum(e, axis=-1, keepdims=True), approx=True)
    o_ref[...] = jnp.einsum("hqk,hkd->hqd", p.astype(v_ref.dtype), v_ref[...],
                            preferred_element_type=jnp.float32
                            ).astype(o_ref.dtype)


# ---------------------------------------------------------------------------
# Pallas wrappers
# ---------------------------------------------------------------------------

_VMEM_LIMIT = 32 * 1024 * 1024


def _linear(x2d, w, b, *, tm_target=256, tn_target=256):
    """Tiled GEMM: x2d[M,K] (bf16) @ w[K,N] (bf16) + b[1,N] (f32) -> f32[M,N]."""
    M, K = x2d.shape
    K2, N = w.shape
    assert K == K2
    tm = _pick_tile(M, tm_target)
    tn = _pick_tile(N, tn_target)
    return pl.pallas_call(
        _linear_kernel,
        out_shape=jax.ShapeDtypeStruct((M, N), jnp.float32),
        grid=(M // tm, N // tn),
        in_specs=[
            pl.BlockSpec((tm, K), lambda i, j: (i, 0)),
            pl.BlockSpec((K, tn), lambda i, j: (0, j)),
            pl.BlockSpec((1, tn), lambda i, j: (0, j)),
        ],
        out_specs=pl.BlockSpec((tm, tn), lambda i, j: (i, j)),
        compiler_params=pltpu.CompilerParams(
            dimension_semantics=("parallel", "parallel"),
            vmem_limit_bytes=_VMEM_LIMIT,
        ),
    )(x2d, w, b)


def _attention(qh, kh, vh, *, scale):
    """qh/kh/vh: [B, H, S, d_k] bf16 -> [B, H, S, d_k] bf16."""
    B, H, S, d_k = qh.shape
    spec = pl.BlockSpec((None, H, S, d_k), lambda b: (b, 0, 0, 0))
    return pl.pallas_call(
        functools.partial(_attention_kernel, scale=scale),
        out_shape=jax.ShapeDtypeStruct((B, H, S, d_k), jnp.bfloat16),
        grid=(B,),
        in_specs=[spec, spec, spec],
        out_specs=spec,
        compiler_params=pltpu.CompilerParams(
            dimension_semantics=("parallel",),
            vmem_limit_bytes=_VMEM_LIMIT,
        ),
    )(qh, kh, vh)


def multi_head_atten(query, key, value, params, head):
    """Forward pass of MultiHeadAtten (eval mode, mask=None).

    query/key/value: [B, S, E] float32
    params: dict with wq,bq,wk,bk,wv,bv,wo,bo (PyTorch nn.Linear layout).
    """
    B, S, E = query.shape
    d_k = E // head
    M = B * S

    # Pre-transpose PyTorch (out,in) weights to (in,out) once; bf16 MXU inputs.
    wq, wk, wv, wo = (params["w" + n].T.astype(jnp.bfloat16) for n in "qkvo")
    bq, bk, bv, bo = (params["b" + n].reshape(1, E) for n in "qkvo")

    q2d = query.reshape(M, E).astype(jnp.bfloat16)
    k2d = key.reshape(M, E).astype(jnp.bfloat16)
    v2d = value.reshape(M, E).astype(jnp.bfloat16)

    if query is key and key is value:
        # Self-attention fast path: one fused QKV GEMM — activation read once,
        # 3x wider N keeps the MXU fed, lane-dense [M, 3E] output.
        w_qkv = jnp.concatenate([wq, wk, wv], axis=1)        # (E, 3E)
        b_qkv = jnp.concatenate([bq, bk, bv], axis=1)        # (1, 3E)
        qkv = _linear(q2d, w_qkv, b_qkv)                     # [M, 3E] f32
        qkv = qkv.reshape(B, S, 3, head, d_k).astype(jnp.bfloat16)
        qkv = jnp.transpose(qkv, (2, 0, 3, 1, 4))            # [3, B, H, S, dk]
        qh, kh, vh = qkv[0], qkv[1], qkv[2]
    else:
        # Cross-attention: distinct inputs -> three tiled GEMMs.
        def split_heads(y2d):
            y = y2d.reshape(B, S, head, d_k).astype(jnp.bfloat16)
            return jnp.transpose(y, (0, 2, 1, 3))            # [B, H, S, d_k]

        qh = split_heads(_linear(q2d, wq, bq))
        kh = split_heads(_linear(k2d, wk, bk))
        vh = split_heads(_linear(v2d, wv, bv))

    ctx = _attention(qh, kh, vh, scale=1.0 / math.sqrt(d_k))  # [B,H,S,dk] bf16

    # x.transpose(1, 2).contiguous().view(bs, -1, h * d_k)
    x = jnp.transpose(ctx, (0, 2, 1, 3)).reshape(M, E)
    out = _linear(x, wo, bo)                                  # [M, E] f32
    return out.reshape(B, S, E)


# ---------------------------------------------------------------------------
# Deterministic parameter init (PyTorch nn.Linear-style uniform bounds)
# ---------------------------------------------------------------------------

def init_params(key, embedding_dim):
    bound = 1.0 / math.sqrt(embedding_dim)
    names = ["q", "k", "v", "o"]
    params = {}
    keys = jax.random.split(key, 2 * len(names))
    for i, n in enumerate(names):
        params["w" + n] = jax.random.uniform(
            keys[2 * i], (embedding_dim, embedding_dim), jnp.float32, -bound, bound
        )
        params["b" + n] = jax.random.uniform(
            keys[2 * i + 1], (embedding_dim,), jnp.float32, -bound, bound
        )
    return params


if __name__ == "__main__":
    B, S, E, HEAD = 2, 8, 32, 4

    root = jax.random.PRNGKey(0)
    kp, kq, kk, kv = jax.random.split(root, 4)

    params = init_params(kp, E)
    query = jax.random.normal(kq, (B, S, E), jnp.float32)
    key_in = jax.random.normal(kk, (B, S, E), jnp.float32)
    value = jax.random.normal(kv, (B, S, E), jnp.float32)

    # Cross-attention path (distinct q/k/v -> three tiled projection GEMMs).
    out = multi_head_atten(query, key_in, value, params, HEAD)
    jax.block_until_ready(out)
    assert out.shape == (B, S, E) and out.dtype == jnp.float32

    # Self-attention path (q is k is v -> fused QKV GEMM).
    out_sa = multi_head_atten(query, query, query, params, HEAD)
    jax.block_until_ready(out_sa)
    assert out_sa.shape == (B, S, E) and out_sa.dtype == jnp.float32

    print("KERNEL_OK")
</pallas_src>

<mosaic_0001>
module attributes {stable_mosaic.version = 11 : i64} {
  func.func @_linear_kernel(%arg0: i32, %arg1: i32, %arg2: memref<16x32xbf16, #tpu.memory_space<vmem>>, %arg3: memref<32x32xbf16, #tpu.memory_space<vmem>>, %arg4: memref<1x32xf32, #tpu.memory_space<vmem>>, %arg5: memref<16x32xf32, #tpu.memory_space<vmem>>) attributes {dimension_semantics = [#tpu.dimension_semantics<parallel>, #tpu.dimension_semantics<parallel>], iteration_bounds = array<i64: 1, 1>, scalar_prefetch = 0 : i64, scratch_operands = 0 : i64, tpu.core_type = #tpu.core_type<tc>, window_params = [{transform_indices = @transform_0, window_bounds = array<i64: 16, 32>}, {transform_indices = @transform_1, window_bounds = array<i64: 32, 32>}, {transform_indices = @transform_2, window_bounds = array<i64: 1, 32>}, {transform_indices = @transform_3, window_bounds = array<i64: 16, 32>}]} {
    %c0 = arith.constant 0 : index
    %c0_0 = arith.constant 0 : index
    %0 = vector.load %arg2[%c0, %c0_0] : memref<16x32xbf16, #tpu.memory_space<vmem>>, vector<16x32xbf16>
    %c0_1 = arith.constant 0 : index
    %c0_2 = arith.constant 0 : index
    %1 = vector.load %arg3[%c0_1, %c0_2] : memref<32x32xbf16, #tpu.memory_space<vmem>>, vector<32x32xbf16>
    %cst = arith.constant dense<0.000000e+00> : vector<16x32xf32>
    %2 = tpu.matmul %0, %1, %cst {dimension_numbers = #tpu.dot_dimension_numbers<[1], [0], [0], [1], [0, 0, 1, 1], [], []>} : vector<16x32xbf16>, vector<32x32xbf16>, vector<16x32xf32> -> vector<16x32xf32>
    %c0_3 = arith.constant 0 : index
    %c0_4 = arith.constant 0 : index
    %3 = vector.load %arg4[%c0_3, %c0_4] : memref<1x32xf32, #tpu.memory_space<vmem>>, vector<1x32xf32>
    %4 = vector.broadcast %3 : vector<1x32xf32> to vector<16x32xf32>
    %5 = arith.addf %2, %4 : vector<16x32xf32>
    %c0_5 = arith.constant 0 : index
    %c0_6 = arith.constant 0 : index
    %6 = vector.load %arg5[%c0_5, %c0_6] : memref<16x32xf32, #tpu.memory_space<vmem>>, vector<16x32xf32>
    tpu.vector_store %arg5[%c0_5, %c0_6], %5 {strides = array<i32>} : memref<16x32xf32, #tpu.memory_space<vmem>>, vector<16x32xf32>,
    return
  }
  func.func @transform_0(%arg0: i32, %arg1: i32) -> (i32, i32) {
    %c0_i32 = arith.constant 0 : i32
    %c0_i32_0 = arith.constant 0 : i32
    return %arg0, %c0_i32 : i32, i32
  }
  func.func @transform_1(%arg0: i32, %arg1: i32) -> (i32, i32) {
    %c0_i32 = arith.constant 0 : i32
    %c0_i32_0 = arith.constant 0 : i32
    return %c0_i32, %arg1 : i32, i32
  }
  func.func @transform_2(%arg0: i32, %arg1: i32) -> (i32, i32) {
    %c0_i32 = arith.constant 0 : i32
    %c0_i32_0 = arith.constant 0 : i32
    return %c0_i32, %arg1 : i32, i32
  }
  func.func @transform_3(%arg0: i32, %arg1: i32) -> (i32, i32) {
    %c0_i32 = arith.constant 0 : i32
    return %arg0, %arg1 : i32, i32
  }
}

</mosaic_0001>

<llo_original>
// kernel: tpu_custom_call.1
$region0: #{tpu_custom_call.1}
  #allocation0 [shape = 'u32[]', space=smem, size = 0x4, offset = 0x4, fixed_abs, tag = 'smem constant byte address 0x4 - core index']
  #allocation1 [shape = 'u32[72,128]{1,0:T(1,128)}', space=vmem, size = 0x9000, scoped, tag = 'internal scratch']
  %s0 = inlined_call_operand.hbm [shape: bf16[16,32], index: 0, kind: input, shape index: {}]
  %s1 = inlined_call_operand.hbm [shape: bf16[32,32], index: 1, kind: input, shape index: {}]
  %s2 = inlined_call_operand.vmem [shape: f32[1,32], index: 2, kind: input, shape index: {}]
  %s3 = inlined_call_operand.hbm [shape: f32[16,32], index: 3, kind: output, shape index: {}]
  %s4 = sld [smem:[#allocation0]]
  $region30: #{tpu_custom_call.1} parent=0
    _
  %s6 = ssub.s32 1, %s4
  %s7 = scalar_select 0, %s6, %s4
  $region1: #{tpu_custom_call.1} parent=0
    #allocation2 [shape = 'u8[4096]{0}', space=vmem, size = 0x1000, scoped, tag = 'input window, operand 0, single buffered']
    #allocation3 [shape = 's32[1]{0}', space=sflag, size = 0x4, scoped, tag = 'scoped memory for tpu_custom_call.1']
    #allocation4 [shape = 's32[1]{0}', space=sflag, size = 0x4, scoped, tag = 'scoped memory for tpu_custom_call.1']
    #allocation5 [shape = 'u8[8192]{0}', space=vmem, size = 0x2000, scoped, tag = 'input window, operand 1, single buffered']
    #allocation6 [shape = 's32[1]{0}', space=sflag, size = 0x4, scoped, tag = 'scoped memory for tpu_custom_call.1']
    #allocation7 [shape = 'u8[8192]{0}', space=vmem, size = 0x2000, scoped, tag = 'output window, operand 0, single buffered']
    %8 = vsyncpa [#allocation3], 0
    %9 = vsyncpa [#allocation6], 0
    %10 = vsyncpa [#allocation4], 0
    // Predicated region
    $region2: #{tpu_custom_call.1} parent=1 // pred_check
      _
    $region3: #{tpu_custom_call.1} parent=1 // pred_check_branch
      %12 = sbr.rel (0) target = $region5
    $region4: #{tpu_custom_call.1} parent=1 // pred_region
      %14 = vsyncadd [#allocation3], 0
      %s15 = sshll.u32 %s0, 4
      %s16 = int_to_ptr.hbm [resolvable:$true] %s15
      %s17 = sshll.u32 [#allocation2], 4
      %s18 = int_to_ptr.vmem [resolvable:$true] %s17
      %23 = dma.hbm_to_vmem [thread:$0]  %s16, 128, %s18, [#allocation3], 64, 64, 4
    $region5: #{tpu_custom_call.1} parent=1 // pred_fallthru
      _
    // Predicated region
    $region6: #{tpu_custom_call.1} parent=1 // pred_check
      _
    $region7: #{tpu_custom_call.1} parent=1 // pred_check_branch
      %25 = sbr.rel (0) target = $region9
    $region8: #{tpu_custom_call.1} parent=1 // pred_region
      %27 = vsyncadd [#allocation6], 0
      %s28 = sshll.u32 %s1, 4
      %s29 = int_to_ptr.hbm [resolvable:$true] %s28
      %s30 = sshll.u32 [#allocation5], 4
      %s31 = int_to_ptr.vmem [resolvable:$true] %s30
      %36 = dma.hbm_to_vmem [thread:$0]  %s29, 256, %s31, [#allocation6], 64, 64, 4
    $region9: #{tpu_custom_call.1} parent=1 // pred_fallthru
      _
    // Predicated region
    $region10: #{tpu_custom_call.1} parent=1 // pred_check
      _
    $region11: #{tpu_custom_call.1} parent=1 // pred_check_branch
      %38 = sbr.rel (0) target = $region13
    $region12: #{tpu_custom_call.1} parent=1 // pred_region
      _
    $region13: #{tpu_custom_call.1} parent=1 // pred_fallthru
      _
    // Predicated region
    $region14: #{tpu_custom_call.1} parent=1 // pred_check
      _
    $region15: #{tpu_custom_call.1} parent=1 // pred_check_branch
      %40 = sbr.rel (0) target = $region17
    $region16: #{tpu_custom_call.1} parent=1 // pred_region
      %42 = dma.done [#allocation3], 128
    $region17: #{tpu_custom_call.1} parent=1 // pred_fallthru
      _
    // Predicated region
    $region18: #{tpu_custom_call.1} parent=1 // pred_check
      _
    $region19: #{tpu_custom_call.1} parent=1 // pred_check_branch
      %44 = sbr.rel (0) target = $region21
    $region20: #{tpu_custom_call.1} parent=1 // pred_region
      %46 = dma.done [#allocation6], 256
    $region21: #{tpu_custom_call.1} parent=1 // pred_fallthru
      _
    %v48 = vld [vmem:[#allocation2] sm:$0xf]
    %v49 = vld [vmem:[#allocation2 + $0x4] sm:$0xf]
    %v50 = vld [vmem:[#allocation5] sm:$0xf]
    %v51 = vld [vmem:[#allocation5 + $0x4] sm:$0xf]
    %v52 = vld [vmem:[#allocation5 + $0x8] sm:$0xf]
    %v53 = vld [vmem:[#allocation5 + $0xc] sm:$0xf]
    %v54 = vld [vmem:[%s2] sm:$0x1]
    %v56 = vperm.slane %v54, 0
    %v60 = vunpack.c.l.b16 %v48
    %v61 = vunpack.c.l.b16 %v49
    %v62 = vpack.c.b16 %v61, %v60
    %v67 = vunpack.c.l.b16 %v50
    %v68 = vunpack.c.l.b16 %v51
    %v69 = vunpack.c.l.b16 %v52
    %v70 = vunpack.c.l.b16 %v53
    %v71 = vpack.c.b16 %v68, %v67
    %v72 = vpack.c.b16 %v70, %v69
    %vm75 = vcmask 261120
    %v77 = vsel %vm75, %v62, 0
    %79 = vmatpush.bf16.msra.mxu0 0
    %80 = vmatpush.bf16.msra.mxu0 0
    %81 = vmatpush.bf16.msra.mxu0 0
    %82 = vmatpush.bf16.msra.mxu0 0
    %83 = vmatpush.bf16.msra.mxu0 0
    %84 = vmatpush.bf16.msra.mxu0 0
    %85 = vmatpush.bf16.msra.mxu0 %v72
    %86 = vmatpush.bf16.msra.mxu0 %v71
    %87 = vmatmul.bf16.gmra.mxu0 %v77
    %v88 = vpop.f32.mrf.mxu0
    %v89 = vadd.f32 %v56, %v88
    %v90 = vpop.f32.mrf.mxu0
    %v91 = vadd.f32 %v56, %v90
    %92 = vdwg.mxu0
    %93 = vst.msk [vmem:[#allocation7] sm:$0xff] %vm75, %v89
    %94 = vst.msk [vmem:[#allocation7 + $0x8] sm:$0xff] %vm75, %v91
    // Predicated region
    $region22: #{tpu_custom_call.1} parent=1 // pred_check
      _
    $region23: #{tpu_custom_call.1} parent=1 // pred_check_branch
      %96 = sbr.rel (0) target = $region25
    $region24: #{tpu_custom_call.1} parent=1 // pred_region
      %98 = vsyncadd [#allocation4], 0
      %s99 = sshll.u32 [#allocation7], 4
      %s100 = int_to_ptr.vmem [resolvable:$true] %s99
      %s101 = sshll.u32 %s3, 4
      %s102 = int_to_ptr.hbm [resolvable:$true] %s101
      %107 = dma.vmem_to_hbm [thread:$0]  %s100, 256, %s102, [#allocation4], 128, 128, 8
    $region25: #{tpu_custom_call.1} parent=1 // pred_fallthru
      _
    // Predicated region
    $region26: #{tpu_custom_call.1} parent=1 // pred_check
      _
    $region27: #{tpu_custom_call.1} parent=1 // pred_check_branch
      %109 = sbr.rel (0) target = $region29
    $region28: #{tpu_custom_call.1} parent=1 // pred_region
      %111 = dma.done [#allocation4], 256
    $region29: #{tpu_custom_call.1} parent=1 // pred_fallthru
      _
    %112 = vsyncpa [#allocation3], 1
    %113 = vsyncpa [#allocation6], 1
    %114 = vsyncpa [#allocation4], 1

</llo_original>
